<compile_context>
chip_gen: v7x
topology: tpu7x:2x2x1
jax: 0.10.0
libtpu: 0.0.40
codegen_flags: <defaults>
</compile_context>

<pallas_src>
import math

import jax
import jax.numpy as jnp
from jax.experimental import pallas as pl
from jax.experimental.pallas import tpu as pltpu


def _round_up(x, m):
    return ((x + m - 1) // m) * m


def _cdiv(a, b):
    return -(-a // b)


def _ae_dqn_kernel(x_ref,
                   w1_ref, b1_ref,
                   w23_ref, b23_ref,
                   w4_ref, b4_ref,
                   out_ref):
    """Fused forward decoder(encoder(x)) for one batch tile (weights resident in VMEM).

    Matmuls run in the weights' dtype (bf16 by default) on the MXU with f32
    accumulation; bias-add / ReLU are done in f32 on the VPU.
    """
    w_dtype = w1_ref.dtype
    x = x_ref[...]

    # Hoist bias loads once per invocation (broadcast is not CSE'd by JAX).
    b1 = b1_ref[...]
    b23 = b23_ref[...]
    b4 = b4_ref[...]

    # encoder L1: Linear(obs -> hidden) + ReLU
    h1 = jnp.dot(x, w1_ref[...], preferred_element_type=jnp.float32) + b1
    h1 = jnp.maximum(h1, 0.0)

    # fused (encoder L2 @ decoder L1): Linear(hidden -> hidden) + ReLU
    h2 = jnp.dot(h1.astype(w_dtype), w23_ref[...],
                 preferred_element_type=jnp.float32) + b23
    h2 = jnp.maximum(h2, 0.0)

    # decoder L2: Linear(hidden -> obs)
    y = jnp.dot(h2.astype(w_dtype), w4_ref[...],
                preferred_element_type=jnp.float32) + b4

    out_ref[...] = y.astype(out_ref.dtype)


def _pad2(a, rows, cols):
    return jnp.pad(a, ((0, rows - a.shape[0]), (0, cols - a.shape[1])))


def prepare_params(params, *, compute_dtype=jnp.bfloat16):
    """One-time prep: fuse w2@w3, zero-pad feature dims to 128 lanes, cast to MXU dtype.

    params: dict with w1,b1,w2,b2,w3,b3,w4,b4 (weights (in,out), biases (1,out)).
    Returns (prepared_params, meta).  Zero padding is numerically exact.
    """
    hp = jax.lax.Precision.HIGHEST
    obs, hid = params["w1"].shape
    act = params["w2"].shape[1]

    # Fuse the two un-activated linears (encoder L2 -> decoder L1): exact.
    w2 = params["w2"].astype(jnp.float32)
    w3 = params["w3"].astype(jnp.float32)
    w23 = jnp.dot(w2, w3, precision=hp)
    b23 = jnp.dot(params["b2"].astype(jnp.float32), w3, precision=hp) \
        + params["b3"].astype(jnp.float32)

    obs_p = _round_up(max(obs, 1), 128)
    hid_p = _round_up(max(hid, 1), 128)

    prepared = {
        "w1": _pad2(params["w1"], obs_p, hid_p).astype(compute_dtype),
        "b1": _pad2(params["b1"].astype(jnp.float32), 1, hid_p),
        "w23": _pad2(w23, hid_p, hid_p).astype(compute_dtype),
        "b23": _pad2(b23, 1, hid_p),
        "w4": _pad2(params["w4"], hid_p, obs_p).astype(compute_dtype),
        "b4": _pad2(params["b4"].astype(jnp.float32), 1, obs_p),
    }
    meta = {"obs": obs, "hid": hid, "act": act,
            "obs_p": obs_p, "hid_p": hid_p, "compute_dtype": compute_dtype}
    return prepared, meta


def _vmem_budget_bytes():
    """Per-generation VMEM cap (v7x: 64 MiB phys -> ~48; v5e/v6e: 128 -> ~96)."""
    cap = 64 << 20  # conservative default (v7x per-TensorCore VMEM)
    try:
        cap = int(pltpu.get_tpu_info().vmem_capacity_bytes)
    except Exception:
        pass
    return min(int(0.75 * cap), 100 << 20)


def _call_kernel(xp, prepared, *, bt, n_tiles, obs_p, hid_p, out_dtype,
                 vmem_limit, cost, single_buffer_weights):
    Bp = xp.shape[0]

    def io_map(i):
        return (i, 0)

    def const_map(i):
        return (0, 0)

    if single_buffer_weights:
        def wspec(shape):
            # Constant index_map -> single buffer is enough; halves weight VMEM.
            return pl.BlockSpec(shape, const_map, pipeline_mode=pl.Buffered(1))
    else:
        def wspec(shape):
            return pl.BlockSpec(shape, const_map)

    return pl.pallas_call(
        _ae_dqn_kernel,
        out_shape=jax.ShapeDtypeStruct((Bp, obs_p), out_dtype),
        grid_spec=pl.GridSpec(
            grid=(n_tiles,),
            in_specs=[
                pl.BlockSpec((bt, obs_p), io_map),     # x tile (streamed)
                wspec((obs_p, hid_p)), wspec((1, hid_p)),   # encoder L1
                wspec((hid_p, hid_p)), wspec((1, hid_p)),   # fused L2@L3
                wspec((hid_p, obs_p)), wspec((1, obs_p)),   # decoder L2
            ],
            out_specs=pl.BlockSpec((bt, obs_p), io_map),
        ),
        compiler_params=pltpu.CompilerParams(
            dimension_semantics=("parallel",),
            vmem_limit_bytes=vmem_limit,
        ),
        cost_estimate=cost,
    )(xp, prepared["w1"], prepared["b1"], prepared["w23"], prepared["b23"],
      prepared["w4"], prepared["b4"])


def autoencoder_dqn_forward(x, prepared, meta, *, batch_tile=512):
    """Computes decoder(encoder(x)) exactly like the PyTorch module's forward."""
    B, obs = x.shape
    assert obs == meta["obs"], "x feature dim does not match prepared params"
    obs_p, hid_p = meta["obs_p"], meta["hid_p"]
    compute_dtype = meta["compute_dtype"]
    out_dtype = jnp.float32

    x_item = jnp.dtype(compute_dtype).itemsize
    out_item = jnp.dtype(out_dtype).itemsize
    w_item = jnp.dtype(compute_dtype).itemsize

    weight_bytes = (w_item * (obs_p * hid_p + hid_p * hid_p + hid_p * obs_p)
                    + 4 * (2 * hid_p + obs_p))

    # Batch tiling: minimize padding (ragged-aware), >= 2 steps for megacore
    # when the batch is large enough, multiple of 8 sublanes.
    n_tiles = max(1, _cdiv(B, batch_tile))
    if n_tiles == 1 and B >= 256:
        n_tiles = 2  # let v7x's second TensorCore share the 'parallel' axis
    bt = _round_up(max(_cdiv(B, n_tiles), 1), 8)

    # Shrink the batch tile until everything fits the per-generation VMEM budget
    # (2x weights is conservative: covers the double-buffered fallback).
    budget = _vmem_budget_bytes()

    def footprint(bt_):
        io = 2 * bt_ * obs_p * (x_item + out_item)   # double-buffered x/out tiles
        acts = 2 * bt_ * hid_p * 4                   # f32 intermediates
        return 2 * weight_bytes + io + acts + (4 << 20)

    while bt > 8 and footprint(bt) > budget:
        bt = _round_up(max(8, bt // 2), 8)
    n_tiles = _cdiv(B, bt)
    Bp = n_tiles * bt

    # Cast + pad the activations (the only per-call padding left).
    xp = _pad2(x.astype(compute_dtype), Bp, obs_p)

    flops = 2 * Bp * (obs_p * hid_p + hid_p * hid_p + hid_p * obs_p)
    bytes_accessed = weight_bytes + Bp * obs_p * (x_item + out_item)
    cost = pl.CostEstimate(flops=flops, transcendentals=0,
                           bytes_accessed=bytes_accessed)

    kwargs = dict(bt=bt, n_tiles=n_tiles, obs_p=obs_p, hid_p=hid_p,
                  out_dtype=out_dtype, vmem_limit=budget, cost=cost)
    try:
        out_padded = jax.block_until_ready(
            _call_kernel(xp, prepared, single_buffer_weights=True, **kwargs))
    except Exception:
        # Some jaxlib versions may reject Buffered(1) in the top-level pipeline;
        # fall back to default double buffering (same numerics, more VMEM).
        out_padded = jax.block_until_ready(
            _call_kernel(xp, prepared, single_buffer_weights=False, **kwargs))

    return out_padded[:B, :obs]


def init_params(key, observation_space, action_space, hidden_dim=128,
                dtype=jnp.float32):
    """Deterministic init mimicking PyTorch nn.Linear default (uniform +-1/sqrt(fan_in))."""
    dims = [
        (observation_space, hidden_dim),   # encoder Linear 1
        (hidden_dim, action_space),        # encoder Linear 2
        (action_space, hidden_dim),        # decoder Linear 1
        (hidden_dim, observation_space),   # decoder Linear 2
    ]
    params = {}
    for idx, (fan_in, fan_out) in enumerate(dims, start=1):
        key, kw, kb = jax.random.split(key, 3)
        bound = 1.0 / math.sqrt(fan_in)
        params[f"w{idx}"] = jax.random.uniform(
            kw, (fan_in, fan_out), dtype=dtype, minval=-bound, maxval=bound)
        params[f"b{idx}"] = jax.random.uniform(
            kb, (1, fan_out), dtype=dtype, minval=-bound, maxval=bound)
    return params


def reference_forward(x, p):
    """Plain-JAX reference of the PyTorch module's forward pass (full f32)."""
    hp = jax.lax.Precision.HIGHEST
    h = jnp.maximum(jnp.dot(x, p["w1"], precision=hp) + p["b1"], 0.0)
    z = jnp.dot(h, p["w2"], precision=hp) + p["b2"]
    h2 = jnp.maximum(jnp.dot(z, p["w3"], precision=hp) + p["b3"], 0.0)
    return jnp.dot(h2, p["w4"], precision=hp) + p["b4"]


if __name__ == "__main__":
    # Small shapes consistent with the module: x is (batch, observation_space).
    batch = 8
    observation_space = 16
    action_space = 4
    hidden_dim = 32

    key = jax.random.PRNGKey(0)
    key, kx = jax.random.split(key)
    x = jax.random.normal(kx, (batch, observation_space), dtype=jnp.float32)
    params = init_params(key, observation_space, action_space, hidden_dim)

    ref = reference_forward(x, params)

    # f32 MXU path: exact vs. reference up to the (mathematically exact) fusion.
    prep32, meta32 = prepare_params(params, compute_dtype=jnp.float32)
    out32 = jax.block_until_ready(autoencoder_dqn_forward(x, prep32, meta32))
    assert out32.shape == (batch, observation_space)
    assert jnp.allclose(out32, ref, atol=1e-4, rtol=1e-4), "f32 path mismatch"

    # bf16 MXU path (default): f32 accumulation/bias/ReLU, looser tolerance.
    prep16, meta16 = prepare_params(params, compute_dtype=jnp.bfloat16)
    out16 = jax.block_until_ready(autoencoder_dqn_forward(x, prep16, meta16))
    assert out16.shape == (batch, observation_space)
    assert jnp.allclose(out16, ref, atol=5e-2, rtol=5e-2), "bf16 path mismatch"

    print("KERNEL_OK")
</pallas_src>

<mosaic_0001>
module attributes {stable_mosaic.version = 11 : i64} {
  func.func @_ae_dqn_kernel(%arg0: i32, %arg1: memref<8x128xf32, #tpu.memory_space<vmem>>, %arg2: memref<128x128xf32, #tpu.memory_space<vmem>>, %arg3: memref<1x128xf32, #tpu.memory_space<vmem>>, %arg4: memref<128x128xf32, #tpu.memory_space<vmem>>, %arg5: memref<1x128xf32, #tpu.memory_space<vmem>>, %arg6: memref<128x128xf32, #tpu.memory_space<vmem>>, %arg7: memref<1x128xf32, #tpu.memory_space<vmem>>, %arg8: memref<8x128xf32, #tpu.memory_space<vmem>>) attributes {dimension_semantics = [#tpu.dimension_semantics<parallel>], iteration_bounds = array<i64: 1>, scalar_prefetch = 0 : i64, scratch_operands = 0 : i64, tpu.core_type = #tpu.core_type<tc>, window_params = [{transform_indices = @transform_0, window_bounds = array<i64: 8, 128>}, {pipeline_mode = #tpu.pipeline_mode<synchronous>, transform_indices = @transform_1, window_bounds = array<i64: 128, 128>}, {pipeline_mode = #tpu.pipeline_mode<synchronous>, transform_indices = @transform_2, window_bounds = array<i64: 1, 128>}, {pipeline_mode = #tpu.pipeline_mode<synchronous>, transform_indices = @transform_3, window_bounds = array<i64: 128, 128>}, {pipeline_mode = #tpu.pipeline_mode<synchronous>, transform_indices = @transform_4, window_bounds = array<i64: 1, 128>}, {pipeline_mode = #tpu.pipeline_mode<synchronous>, transform_indices = @transform_5, window_bounds = array<i64: 128, 128>}, {pipeline_mode = #tpu.pipeline_mode<synchronous>, transform_indices = @transform_6, window_bounds = array<i64: 1, 128>}, {transform_indices = @transform_7, window_bounds = array<i64: 8, 128>}]} {
    %c0 = arith.constant 0 : index
    %c0_0 = arith.constant 0 : index
    %0 = vector.load %arg1[%c0, %c0_0] : memref<8x128xf32, #tpu.memory_space<vmem>>, vector<8x128xf32>
    %c0_1 = arith.constant 0 : index
    %c0_2 = arith.constant 0 : index
    %1 = vector.load %arg3[%c0_1, %c0_2] : memref<1x128xf32, #tpu.memory_space<vmem>>, vector<1x128xf32>
    %c0_3 = arith.constant 0 : index
    %c0_4 = arith.constant 0 : index
    %2 = vector.load %arg5[%c0_3, %c0_4] : memref<1x128xf32, #tpu.memory_space<vmem>>, vector<1x128xf32>
    %c0_5 = arith.constant 0 : index
    %c0_6 = arith.constant 0 : index
    %3 = vector.load %arg7[%c0_5, %c0_6] : memref<1x128xf32, #tpu.memory_space<vmem>>, vector<1x128xf32>
    %c0_7 = arith.constant 0 : index
    %c0_8 = arith.constant 0 : index
    %4 = vector.load %arg2[%c0_7, %c0_8] : memref<128x128xf32, #tpu.memory_space<vmem>>, vector<128x128xf32>
    %cst = arith.constant dense<0.000000e+00> : vector<8x128xf32>
    %5 = tpu.matmul %0, %4, %cst {dimension_numbers = #tpu.dot_dimension_numbers<[1], [0], [0], [1], [0, 0, 1, 1], [], []>} : vector<8x128xf32>, vector<128x128xf32>, vector<8x128xf32> -> vector<8x128xf32>
    %6 = vector.broadcast %1 : vector<1x128xf32> to vector<8x128xf32>
    %7 = arith.addf %5, %6 : vector<8x128xf32>
    %cst_9 = arith.constant 0.000000e+00 : f32
    %8 = vector.broadcast %cst_9 : f32 to vector<8x128xf32>
    %9 = arith.maximumf %7, %8 : vector<8x128xf32>
    %c0_10 = arith.constant 0 : index
    %c0_11 = arith.constant 0 : index
    %10 = vector.load %arg4[%c0_10, %c0_11] : memref<128x128xf32, #tpu.memory_space<vmem>>, vector<128x128xf32>
    %cst_12 = arith.constant dense<0.000000e+00> : vector<8x128xf32>
    %11 = tpu.matmul %9, %10, %cst_12 {dimension_numbers = #tpu.dot_dimension_numbers<[1], [0], [0], [1], [0, 0, 1, 1], [], []>} : vector<8x128xf32>, vector<128x128xf32>, vector<8x128xf32> -> vector<8x128xf32>
    %12 = vector.broadcast %2 : vector<1x128xf32> to vector<8x128xf32>
    %13 = arith.addf %11, %12 : vector<8x128xf32>
    %cst_13 = arith.constant 0.000000e+00 : f32
    %14 = vector.broadcast %cst_13 : f32 to vector<8x128xf32>
    %15 = arith.maximumf %13, %14 : vector<8x128xf32>
    %c0_14 = arith.constant 0 : index
    %c0_15 = arith.constant 0 : index
    %16 = vector.load %arg6[%c0_14, %c0_15] : memref<128x128xf32, #tpu.memory_space<vmem>>, vector<128x128xf32>
    %cst_16 = arith.constant dense<0.000000e+00> : vector<8x128xf32>
    %17 = tpu.matmul %15, %16, %cst_16 {dimension_numbers = #tpu.dot_dimension_numbers<[1], [0], [0], [1], [0, 0, 1, 1], [], []>} : vector<8x128xf32>, vector<128x128xf32>, vector<8x128xf32> -> vector<8x128xf32>
    %18 = vector.broadcast %3 : vector<1x128xf32> to vector<8x128xf32>
    %19 = arith.addf %17, %18 : vector<8x128xf32>
    %c0_17 = arith.constant 0 : index
    %c0_18 = arith.constant 0 : index
    %20 = vector.load %arg8[%c0_17, %c0_18] : memref<8x128xf32, #tpu.memory_space<vmem>>, vector<8x128xf32>
    tpu.vector_store %arg8[%c0_17, %c0_18], %19 {strides = array<i32>} : memref<8x128xf32, #tpu.memory_space<vmem>>, vector<8x128xf32>,
    return
  }
  func.func @transform_0(%arg0: i32) -> (i32, i32) {
    %c0_i32 = arith.constant 0 : i32
    %c0_i32_0 = arith.constant 0 : i32
    return %arg0, %c0_i32 : i32, i32
  }
  func.func @transform_1(%arg0: i32) -> (i32, i32) {
    %c0_i32 = arith.constant 0 : i32
    %c0_i32_0 = arith.constant 0 : i32
    %c0_i32_1 = arith.constant 0 : i32
    return %c0_i32, %c0_i32_0 : i32, i32
  }
  func.func @transform_2(%arg0: i32) -> (i32, i32) {
    %c0_i32 = arith.constant 0 : i32
    %c0_i32_0 = arith.constant 0 : i32
    %c0_i32_1 = arith.constant 0 : i32
    return %c0_i32, %c0_i32_0 : i32, i32
  }
  func.func @transform_3(%arg0: i32) -> (i32, i32) {
    %c0_i32 = arith.constant 0 : i32
    %c0_i32_0 = arith.constant 0 : i32
    %c0_i32_1 = arith.constant 0 : i32
    return %c0_i32, %c0_i32_0 : i32, i32
  }
  func.func @transform_4(%arg0: i32) -> (i32, i32) {
    %c0_i32 = arith.constant 0 : i32
    %c0_i32_0 = arith.constant 0 : i32
    %c0_i32_1 = arith.constant 0 : i32
    return %c0_i32, %c0_i32_0 : i32, i32
  }
  func.func @transform_5(%arg0: i32) -> (i32, i32) {
    %c0_i32 = arith.constant 0 : i32
    %c0_i32_0 = arith.constant 0 : i32
    %c0_i32_1 = arith.constant 0 : i32
    return %c0_i32, %c0_i32_0 : i32, i32
  }
  func.func @transform_6(%arg0: i32) -> (i32, i32) {
    %c0_i32 = arith.constant 0 : i32
    %c0_i32_0 = arith.constant 0 : i32
    %c0_i32_1 = arith.constant 0 : i32
    return %c0_i32, %c0_i32_0 : i32, i32
  }
  func.func @transform_7(%arg0: i32) -> (i32, i32) {
    %c0_i32 = arith.constant 0 : i32
    %c0_i32_0 = arith.constant 0 : i32
    return %arg0, %c0_i32 : i32, i32
  }
}

module attributes {stable_mosaic.version = 11 : i64} {
  func.func @_ae_dqn_kernel(%arg0: i32, %arg1: memref<8x128xf32, #tpu.memory_space<vmem>>, %arg2: memref<128x128xf32, #tpu.memory_space<vmem>>, %arg3: memref<1x128xf32, #tpu.memory_space<vmem>>, %arg4: memref<128x128xf32, #tpu.memory_space<vmem>>, %arg5: memref<1x128xf32, #tpu.memory_space<vmem>>, %arg6: memref<128x128xf32, #tpu.memory_space<vmem>>, %arg7: memref<1x128xf32, #tpu.memory_space<vmem>>, %arg8: memref<8x128xf32, #tpu.memory_space<vmem>>) attributes {dimension_semantics = [#tpu.dimension_semantics<parallel>], iteration_bounds = array<i64: 1>, scalar_prefetch = 0 : i64, scratch_operands = 0 : i64, tpu.core_type = #tpu.core_type<tc>, window_params = [{transform_indices = @transform_0, window_bounds = array<i64: 8, 128>}, {pipeline_mode = #tpu.pipeline_mode<synchronous>, transform_indices = @transform_1, window_bounds = array<i64: 128, 128>}, {pipeline_mode = #tpu.pipeline_mode<synchronous>, transform_indices = @transform_2, window_bounds = array<i64: 1, 128>}, {pipeline_mode = #tpu.pipeline_mode<synchronous>, transform_indices = @transform_3, window_bounds = array<i64: 128, 128>}, {pipeline_mode = #tpu.pipeline_mode<synchronous>, transform_indices = @transform_4, window_bounds = array<i64: 1, 128>}, {pipeline_mode = #tpu.pipeline_mode<synchronous>, transform_indices = @transform_5, window_bounds = array<i64: 128, 128>}, {pipeline_mode = #tpu.pipeline_mode<synchronous>, transform_indices = @transform_6, window_bounds = array<i64: 1, 128>}, {transform_indices = @transform_7, window_bounds = array<i64: 8, 128>}]} {
    %c0 = arith.constant 0 : index
    %c0_0 = arith.constant 0 : index
    %0 = vector.load %arg1[%c0, %c0_0] : memref<8x128xf32, #tpu.memory_space<vmem>>, vector<8x128xf32>
    %c0_1 = arith.constant 0 : index
    %c0_2 = arith.constant 0 : index
    %1 = vector.load %arg3[%c0_1, %c0_2] : memref<1x128xf32, #tpu.memory_space<vmem>>, vector<1x128xf32>
    %c0_3 = arith.constant 0 : index
    %c0_4 = arith.constant 0 : index
    %2 = vector.load %arg5[%c0_3, %c0_4] : memref<1x128xf32, #tpu.memory_space<vmem>>, vector<1x128xf32>
    %c0_5 = arith.constant 0 : index
    %c0_6 = arith.constant 0 : index
    %3 = vector.load %arg7[%c0_5, %c0_6] : memref<1x128xf32, #tpu.memory_space<vmem>>, vector<1x128xf32>
    %c0_7 = arith.constant 0 : index
    %c0_8 = arith.constant 0 : index
    %4 = vector.load %arg2[%c0_7, %c0_8] : memref<128x128xf32, #tpu.memory_space<vmem>>, vector<128x128xf32>
    %cst = arith.constant dense<0.000000e+00> : vector<8x128xf32>
    %5 = tpu.matmul %0, %4, %cst {dimension_numbers = #tpu.dot_dimension_numbers<[1], [0], [0], [1], [0, 0, 1, 1], [], []>} : vector<8x128xf32>, vector<128x128xf32>, vector<8x128xf32> -> vector<8x128xf32>
    %6 = vector.broadcast %1 : vector<1x128xf32> to vector<8x128xf32>
    %7 = arith.addf %5, %6 : vector<8x128xf32>
    %cst_9 = arith.constant 0.000000e+00 : f32
    %8 = vector.broadcast %cst_9 : f32 to vector<8x128xf32>
    %9 = arith.maximumf %7, %8 : vector<8x128xf32>
    %c0_10 = arith.constant 0 : index
    %c0_11 = arith.constant 0 : index
    %10 = vector.load %arg4[%c0_10, %c0_11] : memref<128x128xf32, #tpu.memory_space<vmem>>, vector<128x128xf32>
    %cst_12 = arith.constant dense<0.000000e+00> : vector<8x128xf32>
    %11 = tpu.matmul %9, %10, %cst_12 {dimension_numbers = #tpu.dot_dimension_numbers<[1], [0], [0], [1], [0, 0, 1, 1], [], []>} : vector<8x128xf32>, vector<128x128xf32>, vector<8x128xf32> -> vector<8x128xf32>
    %12 = vector.broadcast %2 : vector<1x128xf32> to vector<8x128xf32>
    %13 = arith.addf %11, %12 : vector<8x128xf32>
    %cst_13 = arith.constant 0.000000e+00 : f32
    %14 = vector.broadcast %cst_13 : f32 to vector<8x128xf32>
    %15 = arith.maximumf %13, %14 : vector<8x128xf32>
    %c0_14 = arith.constant 0 : index
    %c0_15 = arith.constant 0 : index
    %16 = vector.load %arg6[%c0_14, %c0_15] : memref<128x128xf32, #tpu.memory_space<vmem>>, vector<128x128xf32>
    %cst_16 = arith.constant dense<0.000000e+00> : vector<8x128xf32>
    %17 = tpu.matmul %15, %16, %cst_16 {dimension_numbers = #tpu.dot_dimension_numbers<[1], [0], [0], [1], [0, 0, 1, 1], [], []>} : vector<8x128xf32>, vector<128x128xf32>, vector<8x128xf32> -> vector<8x128xf32>
    %18 = vector.broadcast %3 : vector<1x128xf32> to vector<8x128xf32>
    %19 = arith.addf %17, %18 : vector<8x128xf32>
    %c0_17 = arith.constant 0 : index
    %c0_18 = arith.constant 0 : index
    %20 = vector.load %arg8[%c0_17, %c0_18] : memref<8x128xf32, #tpu.memory_space<vmem>>, vector<8x128xf32>
    tpu.vector_store %arg8[%c0_17, %c0_18], %19 {strides = array<i32>} : memref<8x128xf32, #tpu.memory_space<vmem>>, vector<8x128xf32>,
    return
  }
  func.func @transform_0(%arg0: i32) -> (i32, i32) {
    %c0_i32 = arith.constant 0 : i32
    %c0_i32_0 = arith.constant 0 : i32
    return %arg0, %c0_i32 : i32, i32
  }
  func.func @transform_1(%arg0: i32) -> (i32, i32) {
    %c0_i32 = arith.constant 0 : i32
    %c0_i32_0 = arith.constant 0 : i32
    %c0_i32_1 = arith.constant 0 : i32
    return %c0_i32, %c0_i32_0 : i32, i32
  }
  func.func @transform_2(%arg0: i32) -> (i32, i32) {
    %c0_i32 = arith.constant 0 : i32
    %c0_i32_0 = arith.constant 0 : i32
    %c0_i32_1 = arith.constant 0 : i32
    return %c0_i32, %c0_i32_0 : i32, i32
  }
  func.func @transform_3(%arg0: i32) -> (i32, i32) {
    %c0_i32 = arith.constant 0 : i32
    %c0_i32_0 = arith.constant 0 : i32
    %c0_i32_1 = arith.constant 0 : i32
    return %c0_i32, %c0_i32_0 : i32, i32
  }
  func.func @transform_4(%arg0: i32) -> (i32, i32) {
    %c0_i32 = arith.constant 0 : i32
    %c0_i32_0 = arith.constant 0 : i32
    %c0_i32_1 = arith.constant 0 : i32
    return %c0_i32, %c0_i32_0 : i32, i32
  }
  func.func @transform_5(%arg0: i32) -> (i32, i32) {
    %c0_i32 = arith.constant 0 : i32
    %c0_i32_0 = arith.constant 0 : i32
    %c0_i32_1 = arith.constant 0 : i32
    return %c0_i32, %c0_i32_0 : i32, i32
  }
  func.func @transform_6(%arg0: i32) -> (i32, i32) {
    %c0_i32 = arith.constant 0 : i32
    %c0_i32_0 = arith.constant 0 : i32
    %c0_i32_1 = arith.constant 0 : i32
    return %c0_i32, %c0_i32_0 : i32, i32
  }
  func.func @transform_7(%arg0: i32) -> (i32, i32) {
    %c0_i32 = arith.constant 0 : i32
    %c0_i32_0 = arith.constant 0 : i32
    return %arg0, %c0_i32 : i32, i32
  }
}

</mosaic_0001>

<llo_original>
// kernel: tpu_custom_call.1
$region0: #{tpu_custom_call.1}
  #allocation0 [shape = 'u32[]', space=smem, size = 0x4, offset = 0x4, fixed_abs, tag = 'smem constant byte address 0x4 - core index']
  #allocation1 [shape = 'u32[144,128]{1,0:T(1,128)}', space=vmem, size = 0x12000, scoped, tag = 'internal scratch']
  %s0 = inlined_call_operand.hbm [shape: f32[8,128], index: 0, kind: input, shape index: {}]
  %s1 = inlined_call_operand.hbm [shape: f32[128,128], index: 1, kind: input, shape index: {}]
  %s2 = inlined_call_operand.vmem [shape: f32[1,128], index: 2, kind: input, shape index: {}]
  %s3 = inlined_call_operand.hbm [shape: f32[128,128], index: 3, kind: input, shape index: {}]
  %s4 = inlined_call_operand.vmem [shape: f32[1,128], index: 4, kind: input, shape index: {}]
  %s5 = inlined_call_operand.hbm [shape: f32[128,128], index: 5, kind: input, shape index: {}]
  %s6 = inlined_call_operand.vmem [shape: f32[1,128], index: 6, kind: input, shape index: {}]
  %s7 = inlined_call_operand.hbm [shape: f32[8,128], index: 7, kind: output, shape index: {}]
  %s8 = sld [smem:[#allocation0]]
  $region54: #{tpu_custom_call.1} parent=0
    _
  %s10 = ssub.s32 1, %s8
  %s11 = scalar_select 0, %s10, %s8
  $region1: #{tpu_custom_call.1} parent=0
    #allocation2 [shape = 'u8[4096]{0}', space=vmem, size = 0x1000, scoped, tag = 'input window, operand 0, single buffered']
    #allocation3 [shape = 's32[1]{0}', space=sflag, size = 0x4, scoped, tag = 'scoped memory for tpu_custom_call.1']
    #allocation4 [shape = 's32[1]{0}', space=sflag, size = 0x4, scoped, tag = 'scoped memory for tpu_custom_call.1']
    #allocation5 [shape = 'u8[65536]{0}', space=vmem, size = 0x10000, scoped, tag = 'input window, operand 1, single buffered']
    #allocation6 [shape = 's32[1]{0}', space=sflag, size = 0x4, scoped, tag = 'scoped memory for tpu_custom_call.1']
    #allocation7 [shape = 'u8[65536]{0}', space=vmem, size = 0x10000, scoped, tag = 'input window, operand 3, single buffered']
    #allocation8 [shape = 'u8[65536]{0}', space=vmem, size = 0x10000, scoped, tag = 'input window, operand 5, single buffered']
    #allocation9 [shape = 's32[1]{0}', space=sflag, size = 0x4, scoped, tag = 'scoped memory for tpu_custom_call.1']
    #allocation10 [shape = 'u8[4096]{0}', space=vmem, size = 0x1000, scoped, tag = 'output window, operand 0, single buffered']
    %12 = vsyncpa [#allocation3], 0
    %13 = vsyncpa [#allocation6], 0
    %14 = vsyncpa [#allocation9], 0
    %15 = vsyncpa [#allocation4], 0
    // Predicated region
    $region2: #{tpu_custom_call.1} parent=1 // pred_check
      _
    $region3: #{tpu_custom_call.1} parent=1 // pred_check_branch
      %17 = sbr.rel (0) target = $region5
    $region4: #{tpu_custom_call.1} parent=1 // pred_region
      %s19 = ssub.s32 128, 128
      %20 = vsyncadd [#allocation3], %s19
      %s22 = sshll.u32 [#allocation2], 4
      %s23 = int_to_ptr.vmem [resolvable:$true] %s22
      %25 = dma.hbm_to_vmem [thread:$0]  %s0, 128, %s23, [#allocation3]
    $region5: #{tpu_custom_call.1} parent=1 // pred_fallthru
      _
    // Predicated region
    $region6: #{tpu_custom_call.1} parent=1 // pred_check
      _
    $region7: #{tpu_custom_call.1} parent=1 // pred_check_branch
      %27 = sbr.rel (0) target = $region9
    $region8: #{tpu_custom_call.1} parent=1 // pred_region
      %s29 = ssub.s32 2048, 2048
      %30 = vsyncadd [#allocation6], %s29
      %s31 = sshll.u32 [#allocation5], 4
      %s32 = int_to_ptr.vmem [resolvable:$true] %s31
      %37 = dma.hbm_to_vmem [thread:$0]  %s1, 2048, %s32, [#allocation6], 128, 128, 8
    $region9: #{tpu_custom_call.1} parent=1 // pred_fallthru
      _
    // Predicated region
    $region10: #{tpu_custom_call.1} parent=1 // pred_check
      _
    $region11: #{tpu_custom_call.1} parent=1 // pred_check_branch
      %39 = sbr.rel (0) target = $region13
    $region12: #{tpu_custom_call.1} parent=1 // pred_region
      _
    $region13: #{tpu_custom_call.1} parent=1 // pred_fallthru
      _
    // Predicated region
    $region14: #{tpu_custom_call.1} parent=1 // pred_check
      _
    $region15: #{tpu_custom_call.1} parent=1 // pred_check_branch
      %41 = sbr.rel (0) target = $region17
    $region16: #{tpu_custom_call.1} parent=1 // pred_region
      %s43 = ssub.s32 2048, 2048
      %44 = vsyncadd [#allocation6], %s43
      %s45 = sshll.u32 [#allocation7], 4
      %s46 = int_to_ptr.vmem [resolvable:$true] %s45
      %51 = dma.hbm_to_vmem [thread:$0]  %s3, 2048, %s46, [#allocation6], 128, 128, 8
    $region17: #{tpu_custom_call.1} parent=1 // pred_fallthru
      _
    // Predicated region
    $region18: #{tpu_custom_call.1} parent=1 // pred_check
      _
    $region19: #{tpu_custom_call.1} parent=1 // pred_check_branch
      %53 = sbr.rel (0) target = $region21
    $region20: #{tpu_custom_call.1} parent=1 // pred_region
      _
    $region21: #{tpu_custom_call.1} parent=1 // pred_fallthru
      _
    // Predicated region
    $region22: #{tpu_custom_call.1} parent=1 // pred_check
      _
    $region23: #{tpu_custom_call.1} parent=1 // pred_check_branch
      %55 = sbr.rel (0) target = $region25
    $region24: #{tpu_custom_call.1} parent=1 // pred_region
      %s57 = ssub.s32 2048, 2048
      %58 = vsyncadd [#allocation9], %s57
      %s59 = sshll.u32 [#allocation8], 4
      %s60 = int_to_ptr.vmem [resolvable:$true] %s59
      %65 = dma.hbm_to_vmem [thread:$0]  %s5, 2048, %s60, [#allocation9], 128, 128, 8
    $region25: #{tpu_custom_call.1} parent=1 // pred_fallthru
      _
    // Predicated region
    $region26: #{tpu_custom_call.1} parent=1 // pred_check
      _
    $region27: #{tpu_custom_call.1} parent=1 // pred_check_branch
      %67 = sbr.rel (0) target = $region29
    $region28: #{tpu_custom_call.1} parent=1 // pred_region
      _
    $region29: #{tpu_custom_call.1} parent=1 // pred_fallthru
      _
    // Predicated region
    $region30: #{tpu_custom_call.1} parent=1 // pred_check
      _
    $region31: #{tpu_custom_call.1} parent=1 // pred_check_branch
      %69 = sbr.rel (0) target = $region33
    $region32: #{tpu_custom_call.1} parent=1 // pred_region
      %70 = dma.done [#allocation3], 128
    $region33: #{tpu_custom_call.1} parent=1 // pred_fallthru
      _
    // Predicated region
    $region34: #{tpu_custom_call.1} parent=1 // pred_check
      _
    $region35: #{tpu_custom_call.1} parent=1 // pred_check_branch
      %72 = sbr.rel (0) target = $region37
    $region36: #{tpu_custom_call.1} parent=1 // pred_region
      %73 = dma.done [#allocation6], 2048
    $region37: #{tpu_custom_call.1} parent=1 // pred_fallthru
      _
    // Predicated region
    $region38: #{tpu_custom_call.1} parent=1 // pred_check
      _
    $region39: #{tpu_custom_call.1} parent=1 // pred_check_branch
      %75 = sbr.rel (0) target = $region41
    $region40: #{tpu_custom_call.1} parent=1 // pred_region
      %76 = dma.done [#allocation6], 2048
    $region41: #{tpu_custom_call.1} parent=1 // pred_fallthru
      _
    // Predicated region
    $region42: #{tpu_custom_call.1} parent=1 // pred_check
      _
    $region43: #{tpu_custom_call.1} parent=1 // pred_check_branch
      %78 = sbr.rel (0) target = $region45
    $region44: #{tpu_custom_call.1} parent=1 // pred_region
      %79 = dma.done [#allocation9], 2048
    $region45: #{tpu_custom_call.1} parent=1 // pred_fallthru
      _
    %v80 = vld [vmem:[#allocation2] sm:$0xff]
    %v81 = vld [vmem:[%s2] sm:$0x1]
    %v82 = vld [vmem:[%s4] sm:$0x1]
    %v83 = vld [vmem:[%s6] sm:$0x1]
    %v84 = vld [vmem:[#allocation5] sm:$0xff]
    %v85 = vld [vmem:[#allocation5 + $0x8] sm:$0xff]
    %v86 = vld [vmem:[#allocation5 + $0x10] sm:$0xff]
    %v87 = vld [vmem:[#allocation5 + $0x18] sm:$0xff]
    %v88 = vld [vmem:[#allocation5 + $0x20] sm:$0xff]
    %v89 = vld [vmem:[#allocation5 + $0x28] sm:$0xff]
    %v90 = vld [vmem:[#allocation5 + $0x30] sm:$0xff]
    %v91 = vld [vmem:[#allocation5 + $0x38] sm:$0xff]
    %v92 = vld [vmem:[#allocation5 + $0x40] sm:$0xff]
    %v93 = vld [vmem:[#allocation5 + $0x48] sm:$0xff]
    %v94 = vld [vmem:[#allocation5 + $0x50] sm:$0xff]
    %v95 = vld [vmem:[#allocation5 + $0x58] sm:$0xff]
    %v96 = vld [vmem:[#allocation5 + $0x60] sm:$0xff]
    %v97 = vld [vmem:[#allocation5 + $0x68] sm:$0xff]
    %v98 = vld [vmem:[#allocation5 + $0x70] sm:$0xff]
    %v99 = vld [vmem:[#allocation5 + $0x78] sm:$0xff]
    %v101 = vlaneseq
    %v102 = vshrl.u32 %v101, 7
    %v103 = vsub.s32 0, %v102
    %v104 = vrot.slane %v81, %v103
    %106 = vmatprep.subr.mxu0 0.0
    %107 = vmatpush1.msra.mxu0 %v84
    %108 = vmatprep.subr.mxu0 0.0
    %109 = vmatpush1.msra.mxu0 %v85
    %110 = vmatprep.subr.mxu0 0.0
    %111 = vmatpush1.msra.mxu0 %v86
    %112 = vmatprep.subr.mxu0 0.0
    %113 = vmatpush1.msra.mxu0 %v87
    %114 = vmatprep.subr.mxu0 0.0
    %115 = vmatpush1.msra.mxu0 %v88
    %116 = vmatprep.subr.mxu0 0.0
    %117 = vmatpush1.msra.mxu0 %v89
    %118 = vmatprep.subr.mxu0 0.0
    %119 = vmatpush1.msra.mxu0 %v90
    %120 = vmatprep.subr.mxu0 0.0
    %121 = vmatpush1.msra.mxu0 %v91
    %122 = vmatprep.subr.mxu0 0.0
    %123 = vmatpush1.msra.mxu0 %v92
    %124 = vmatprep.subr.mxu0 0.0
    %125 = vmatpush1.msra.mxu0 %v93
    %126 = vmatprep.subr.mxu0 0.0
    %127 = vmatpush1.msra.mxu0 %v94
    %128 = vmatprep.subr.mxu0 0.0
    %129 = vmatpush1.msra.mxu0 %v95
    %130 = vmatprep.subr.mxu0 0.0
    %131 = vmatpush1.msra.mxu0 %v96
    %132 = vmatprep.subr.mxu0 0.0
    %133 = vmatpush1.msra.mxu0 %v97
    %134 = vmatprep.subr.mxu0 0.0
    %135 = vmatpush1.msra.mxu0 %v98
    %136 = vmatprep.subr.mxu0 0.0
    %137 = vmatpush1.msra.mxu0 %v99
    %138 = vmatprep.subr.mxu0 0.0
    %139 = vmatpush1.msra.mxu0 0.0
    %140 = vmatprep.subr.mxu0 0.0
    %141 = vmatpush1.msra.mxu0 0.0
    %142 = vmatprep.subr.mxu0 0.0
    %143 = vmatpush1.msra.mxu0 0.0
    %144 = vmatprep.subr.mxu0 0.0
    %145 = vmatpush1.msra.mxu0 0.0
    %146 = vmatprep.subr.mxu0 0.0
    %147 = vmatpush1.msra.mxu0 0.0
    %148 = vmatprep.subr.mxu0 0.0
    %149 = vmatpush1.msra.mxu0 0.0
    %150 = vmatprep.subr.mxu0 0.0
    %151 = vmatpush1.msra.mxu0 0.0
    %152 = vmatprep.subr.mxu0 0.0
    %153 = vmatpush1.msra.mxu0 0.0
    %154 = vmatprep.subr.mxu0 0.0
    %155 = vmatpush1.msra.mxu0 0.0
    %156 = vmatprep.subr.mxu0 0.0
    %157 = vmatpush1.msra.mxu0 0.0
    %158 = vmatprep.subr.mxu0 0.0
    %159 = vmatpush1.msra.mxu0 0.0
    %160 = vmatprep.subr.mxu0 0.0
    %161 = vmatpush1.msra.mxu0 0.0
    %162 = vmatprep.subr.mxu0 0.0
    %163 = vmatpush1.msra.mxu0 0.0
    %164 = vmatprep.subr.mxu0 0.0
    %165 = vmatpush1.msra.mxu0 0.0
    %166 = vmatprep.subr.mxu0 0.0
    %167 = vmatpush1.msra.mxu0 0.0
    %168 = vmatprep.subr.mxu0 0.0
    %169 = vmatpush1.msra.mxu0 0.0
    %170 = vmatprep.mubr.f32.mxu0 0.0
    %171 = vmatmul.mubr.f32.gmra.mrb[0].mxu0 %v80
    %v172 = vpop.f32.mrb[0].mxu0
    %v173 = vadd.f32 %v104, %v172
    %v174 = vpop.f32.mrb[0].mxu0
    %175 = vdwg.mxu0
    %v176 = vmax.f32 %v173, 0.0
    %v177 = vld [vmem:[#allocation7] sm:$0xff]
    %v178 = vld [vmem:[#allocation7 + $0x8] sm:$0xff]
    %v179 = vld [vmem:[#allocation7 + $0x10] sm:$0xff]
    %v180 = vld [vmem:[#allocation7 + $0x18] sm:$0xff]
    %v181 = vld [vmem:[#allocation7 + $0x20] sm:$0xff]
    %v182 = vld [vmem:[#allocation7 + $0x28] sm:$0xff]
    %v183 = vld [vmem:[#allocation7 + $0x30] sm:$0xff]
    %v184 = vld [vmem:[#allocation7 + $0x38] sm:$0xff]
    %v185 = vld [vmem:[#allocation7 + $0x40] sm:$0xff]
    %v186 = vld [vmem:[#allocation7 + $0x48] sm:$0xff]
    %v187 = vld [vmem:[#allocation7 + $0x50] sm:$0xff]
    %v188 = vld [vmem:[#allocation7 + $0x58] sm:$0xff]
    %v189 = vld [vmem:[#allocation7 + $0x60] sm:$0xff]
    %v190 = vld [vmem:[#allocation7 + $0x68] sm:$0xff]
    %v191 = vld [vmem:[#allocation7 + $0x70] sm:$0xff]
    %v192 = vld [vmem:[#allocation7 + $0x78] sm:$0xff]
    %v194 = vlaneseq
    %v195 = vshrl.u32 %v194, 7
    %v196 = vsub.s32 0, %v195
    %v197 = vrot.slane %v82, %v196
    %199 = vmatprep.subr.mxu0 0.0
    %200 = vmatpush1.msra.mxu0 %v177
    %201 = vmatprep.subr.mxu0 0.0
    %202 = vmatpush1.msra.mxu0 %v178
    %203 = vmatprep.subr.mxu0 0.0
    %204 = vmatpush1.msra.mxu0 %v179
    %205 = vmatprep.subr.mxu0 0.0
    %206 = vmatpush1.msra.mxu0 %v180
    %207 = vmatprep.subr.mxu0 0.0
    %208 = vmatpush1.msra.mxu0 %v181
    %209 = vmatprep.subr.mxu0 0.0
    %210 = vmatpush1.msra.mxu0 %v182
    %211 = vmatprep.subr.mxu0 0.0
    %212 = vmatpush1.msra.mxu0 %v183
    %213 = vmatprep.subr.mxu0 0.0
    %214 = vmatpush1.msra.mxu0 %v184
    %215 = vmatprep.subr.mxu0 0.0
    %216 = vmatpush1.msra.mxu0 %v185
    %217 = vmatprep.subr.mxu0 0.0
    %218 = vmatpush1.msra.mxu0 %v186
    %219 = vmatprep.subr.mxu0 0.0
    %220 = vmatpush1.msra.mxu0 %v187
    %221 = vmatprep.subr.mxu0 0.0
    %222 = vmatpush1.msra.mxu0 %v188
    %223 = vmatprep.subr.mxu0 0.0
    %224 = vmatpush1.msra.mxu0 %v189
    %225 = vmatprep.subr.mxu0 0.0
    %226 = vmatpush1.msra.mxu0 %v190
    %227 = vmatprep.subr.mxu0 0.0
    %228 = vmatpush1.msra.mxu0 %v191
    %229 = vmatprep.subr.mxu0 0.0
    %230 = vmatpush1.msra.mxu0 %v192
    %231 = vmatprep.subr.mxu0 0.0
    %232 = vmatpush1.msra.mxu0 0.0
    %233 = vmatprep.subr.mxu0 0.0
    %234 = vmatpush1.msra.mxu0 0.0
    %235 = vmatprep.subr.mxu0 0.0
    %236 = vmatpush1.msra.mxu0 0.0
    %237 = vmatprep.subr.mxu0 0.0
    %238 = vmatpush1.msra.mxu0 0.0
    %239 = vmatprep.subr.mxu0 0.0
    %240 = vmatpush1.msra.mxu0 0.0
    %241 = vmatprep.subr.mxu0 0.0
    %242 = vmatpush1.msra.mxu0 0.0
    %243 = vmatprep.subr.mxu0 0.0
    %244 = vmatpush1.msra.mxu0 0.0
    %245 = vmatprep.subr.mxu0 0.0
    %246 = vmatpush1.msra.mxu0 0.0
    %247 = vmatprep.subr.mxu0 0.0
    %248 = vmatpush1.msra.mxu0 0.0
    %249 = vmatprep.subr.mxu0 0.0
    %250 = vmatpush1.msra.mxu0 0.0
    %251 = vmatprep.subr.mxu0 0.0
    %252 = vmatpush1.msra.mxu0 0.0
    %253 = vmatprep.subr.mxu0 0.0
    %254 = vmatpush1.msra.mxu0 0.0
    %255 = vmatprep.subr.mxu0 0.0
    %256 = vmatpush1.msra.mxu0 0.0
    %257 = vmatprep.subr.mxu0 0.0
    %258 = vmatpush1.msra.mxu0 0.0
    %259 = vmatprep.subr.mxu0 0.0
    %260 = vmatpush1.msra.mxu0 0.0
    %261 = vmatprep.subr.mxu0 0.0
    %262 = vmatpush1.msra.mxu0 0.0
    %263 = vmatprep.mubr.f32.mxu0 0.0
    %264 = vmatmul.mubr.f32.gmra.mrb[0].mxu0 %v176
    %v265 = vpop.f32.mrb[0].mxu0
    %v266 = vadd.f32 %v197, %v265
    %v267 = vpop.f32.mrb[0].mxu0
    %268 = vdwg.mxu0
    %v269 = vmax.f32 %v266, 0.0
    %v270 = vld [vmem:[#allocation8] sm:$0xff]
    %v271 = vld [vmem:[#allocation8 + $0x8] sm:$0xff]
    %v272 = vld [vmem:[#allocation8 + $0x10] sm:$0xff]
    %v273 = vld [vmem:[#allocation8 + $0x18] sm:$0xff]
    %v274 = vld [vmem:[#allocation8 + $0x20] sm:$0xff]
    %v275 = vld [vmem:[#allocation8 + $0x28] sm:$0xff]
    %v276 = vld [vmem:[#allocation8 + $0x30] sm:$0xff]
    %v277 = vld [vmem:[#allocation8 + $0x38] sm:$0xff]
    %v278 = vld [vmem:[#allocation8 + $0x40] sm:$0xff]
    %v279 = vld [vmem:[#allocation8 + $0x48] sm:$0xff]
    %v280 = vld [vmem:[#allocation8 + $0x50] sm:$0xff]
    %v281 = vld [vmem:[#allocation8 + $0x58] sm:$0xff]
    %v282 = vld [vmem:[#allocation8 + $0x60] sm:$0xff]
    %v283 = vld [vmem:[#allocation8 + $0x68] sm:$0xff]
    %v284 = vld [vmem:[#allocation8 + $0x70] sm:$0xff]
    %v285 = vld [vmem:[#allocation8 + $0x78] sm:$0xff]
    %v287 = vlaneseq
    %v288 = vshrl.u32 %v287, 7
    %v289 = vsub.s32 0, %v288
    %v290 = vrot.slane %v83, %v289
    %292 = vmatprep.subr.mxu0 0.0
    %293 = vmatpush1.msra.mxu0 %v270
    %294 = vmatprep.subr.mxu0 0.0
    %295 = vmatpush1.msra.mxu0 %v271
    %296 = vmatprep.subr.mxu0 0.0
    %297 = vmatpush1.msra.mxu0 %v272
    %298 = vmatprep.subr.mxu0 0.0
    %299 = vmatpush1.msra.mxu0 %v273
    %300 = vmatprep.subr.mxu0 0.0
    %301 = vmatpush1.msra.mxu0 %v274
    %302 = vmatprep.subr.mxu0 0.0
    %303 = vmatpush1.msra.mxu0 %v275
    %304 = vmatprep.subr.mxu0 0.0
    %305 = vmatpush1.msra.mxu0 %v276
    %306 = vmatprep.subr.mxu0 0.0
    %307 = vmatpush1.msra.mxu0 %v277
    %308 = vmatprep.subr.mxu0 0.0
    %309 = vmatpush1.msra.mxu0 %v278
    %310 = vmatprep.subr.mxu0 0.0
    %311 = vmatpush1.msra.mxu0 %v279
    %312 = vmatprep.subr.mxu0 0.0
    %313 = vmatpush1.msra.mxu0 %v280
    %314 = vmatprep.subr.mxu0 0.0
    %315 = vmatpush1.msra.mxu0 %v281
    %316 = vmatprep.subr.mxu0 0.0
    %317 = vmatpush1.msra.mxu0 %v282
    %318 = vmatprep.subr.mxu0 0.0
    %319 = vmatpush1.msra.mxu0 %v283
    %320 = vmatprep.subr.mxu0 0.0
    %321 = vmatpush1.msra.mxu0 %v284
    %322 = vmatprep.subr.mxu0 0.0
    %323 = vmatpush1.msra.mxu0 %v285
    %324 = vmatprep.subr.mxu0 0.0
    %325 = vmatpush1.msra.mxu0 0.0
    %326 = vmatprep.subr.mxu0 0.0
    %327 = vmatpush1.msra.mxu0 0.0
    %328 = vmatprep.subr.mxu0 0.0
    %329 = vmatpush1.msra.mxu0 0.0
    %330 = vmatprep.subr.mxu0 0.0
    %331 = vmatpush1.msra.mxu0 0.0
    %332 = vmatprep.subr.mxu0 0.0
    %333 = vmatpush1.msra.mxu0 0.0
    %334 = vmatprep.subr.mxu0 0.0
    %335 = vmatpush1.msra.mxu0 0.0
    %336 = vmatprep.subr.mxu0 0.0
    %337 = vmatpush1.msra.mxu0 0.0
    %338 = vmatprep.subr.mxu0 0.0
    %339 = vmatpush1.msra.mxu0 0.0
    %340 = vmatprep.subr.mxu0 0.0
    %341 = vmatpush1.msra.mxu0 0.0
    %342 = vmatprep.subr.mxu0 0.0
    %343 = vmatpush1.msra.mxu0 0.0
    %344 = vmatprep.subr.mxu0 0.0
    %345 = vmatpush1.msra.mxu0 0.0
    %346 = vmatprep.subr.mxu0 0.0
    %347 = vmatpush1.msra.mxu0 0.0
    %348 = vmatprep.subr.mxu0 0.0
    %349 = vmatpush1.msra.mxu0 0.0
    %350 = vmatprep.subr.mxu0 0.0
    %351 = vmatpush1.msra.mxu0 0.0
    %352 = vmatprep.subr.mxu0 0.0
    %353 = vmatpush1.msra.mxu0 0.0
    %354 = vmatprep.subr.mxu0 0.0
    %355 = vmatpush1.msra.mxu0 0.0
    %356 = vmatprep.mubr.f32.mxu0 0.0
    %357 = vmatmul.mubr.f32.gmra.mrb[0].mxu0 %v269
    %v358 = vpop.f32.mrb[0].mxu0
    %v359 = vadd.f32 %v290, %v358
    %v360 = vpop.f32.mrb[0].mxu0
    %361 = vdwg.mxu0
    %362 = vst [vmem:[#allocation10] sm:$0xff] %v359
    // Predicated region
    $region46: #{tpu_custom_call.1} parent=1 // pred_check
      _
    $region47: #{tpu_custom_call.1} parent=1 // pred_check_branch
      %364 = sbr.rel (0) target = $region49
    $region48: #{tpu_custom_call.1} parent=1 // pred_region
      %s366 = ssub.s32 128, 128
      %367 = vsyncadd [#allocation4], %s366
      %s369 = sshll.u32 [#allocation10], 4
      %s370 = int_to_ptr.vmem [resolvable:$true] %s369
      %372 = dma.vmem_to_hbm [thread:$0]  %s370, 128, %s7, [#allocation4]
    $region49: #{tpu_custom_call.1} parent=1 // pred_fallthru
      _
    // Predicated region
    $region50: #{tpu_custom_call.1} parent=1 // pred_check
      _
    $region51: #{tpu_custom_call.1} parent=1 // pred_check_branch
      %374 = sbr.rel (0) target = $region53
    $region52: #{tpu_custom_call.1} parent=1 // pred_region
      %375 = dma.done [#allocation4], 128
    $region53: #{tpu_custom_call.1} parent=1 // pred_fallthru
      _
    %376 = vsyncpa [#allocation3], 1
    %377 = vsyncpa [#allocation6], 1
    %378 = vsyncpa [#allocation9], 1
    %379 = vsyncpa [#allocation4], 1

// kernel: tpu_custom_call.1
$region0: #{tpu_custom_call.1}
  #allocation0 [shape = 'u32[]', space=smem, size = 0x4, offset = 0x4, fixed_abs, tag = 'smem constant byte address 0x4 - core index']
  #allocation1 [shape = 'u32[144,128]{1,0:T(1,128)}', space=vmem, size = 0x12000, scoped, tag = 'internal scratch']
  %s0 = inlined_call_operand.hbm [shape: f32[8,128], index: 0, kind: input, shape index: {}]
  %s1 = inlined_call_operand.hbm [shape: f32[128,128], index: 1, kind: input, shape index: {}]
  %s2 = inlined_call_operand.vmem [shape: f32[1,128], index: 2, kind: input, shape index: {}]
  %s3 = inlined_call_operand.hbm [shape: f32[128,128], index: 3, kind: input, shape index: {}]
  %s4 = inlined_call_operand.vmem [shape: f32[1,128], index: 4, kind: input, shape index: {}]
  %s5 = inlined_call_operand.hbm [shape: f32[128,128], index: 5, kind: input, shape index: {}]
  %s6 = inlined_call_operand.vmem [shape: f32[1,128], index: 6, kind: input, shape index: {}]
  %s7 = inlined_call_operand.hbm [shape: f32[8,128], index: 7, kind: output, shape index: {}]
  %s8 = sld [smem:[#allocation0]]
  $region54: #{tpu_custom_call.1} parent=0
    _
  %s10 = ssub.s32 1, %s8
  %s11 = scalar_select 0, %s10, %s8
  $region1: #{tpu_custom_call.1} parent=0
    #allocation2 [shape = 'u8[4096]{0}', space=vmem, size = 0x1000, scoped, tag = 'input window, operand 0, single buffered']
    #allocation3 [shape = 's32[1]{0}', space=sflag, size = 0x4, scoped, tag = 'scoped memory for tpu_custom_call.1']
    #allocation4 [shape = 's32[1]{0}', space=sflag, size = 0x4, scoped, tag = 'scoped memory for tpu_custom_call.1']
    #allocation5 [shape = 'u8[65536]{0}', space=vmem, size = 0x10000, scoped, tag = 'input window, operand 1, single buffered']
    #allocation6 [shape = 's32[1]{0}', space=sflag, size = 0x4, scoped, tag = 'scoped memory for tpu_custom_call.1']
    #allocation7 [shape = 'u8[65536]{0}', space=vmem, size = 0x10000, scoped, tag = 'input window, operand 3, single buffered']
    #allocation8 [shape = 'u8[65536]{0}', space=vmem, size = 0x10000, scoped, tag = 'input window, operand 5, single buffered']
    #allocation9 [shape = 's32[1]{0}', space=sflag, size = 0x4, scoped, tag = 'scoped memory for tpu_custom_call.1']
    #allocation10 [shape = 'u8[4096]{0}', space=vmem, size = 0x1000, scoped, tag = 'output window, operand 0, single buffered']
    %12 = vsyncpa [#allocation3], 0
    %13 = vsyncpa [#allocation6], 0
    %14 = vsyncpa [#allocation9], 0
    %15 = vsyncpa [#allocation4], 0
    // Predicated region
    $region2: #{tpu_custom_call.1} parent=1 // pred_check
      _
    $region3: #{tpu_custom_call.1} parent=1 // pred_check_branch
      %17 = sbr.rel (0) target = $region5
    $region4: #{tpu_custom_call.1} parent=1 // pred_region
      %s19 = ssub.s32 128, 128
      %20 = vsyncadd [#allocation3], %s19
      %s22 = sshll.u32 [#allocation2], 4
      %s23 = int_to_ptr.vmem [resolvable:$true] %s22
      %25 = dma.hbm_to_vmem [thread:$0]  %s0, 128, %s23, [#allocation3]
    $region5: #{tpu_custom_call.1} parent=1 // pred_fallthru
      _
    // Predicated region
    $region6: #{tpu_custom_call.1} parent=1 // pred_check
      _
    $region7: #{tpu_custom_call.1} parent=1 // pred_check_branch
      %27 = sbr.rel (0) target = $region9
    $region8: #{tpu_custom_call.1} parent=1 // pred_region
      %s29 = ssub.s32 2048, 2048
      %30 = vsyncadd [#allocation6], %s29
      %s31 = sshll.u32 [#allocation5], 4
      %s32 = int_to_ptr.vmem [resolvable:$true] %s31
      %37 = dma.hbm_to_vmem [thread:$0]  %s1, 2048, %s32, [#allocation6], 128, 128, 8
    $region9: #{tpu_custom_call.1} parent=1 // pred_fallthru
      _
    // Predicated region
    $region10: #{tpu_custom_call.1} parent=1 // pred_check
      _
    $region11: #{tpu_custom_call.1} parent=1 // pred_check_branch
      %39 = sbr.rel (0) target = $region13
    $region12: #{tpu_custom_call.1} parent=1 // pred_region
      _
    $region13: #{tpu_custom_call.1} parent=1 // pred_fallthru
      _
    // Predicated region
    $region14: #{tpu_custom_call.1} parent=1 // pred_check
      _
    $region15: #{tpu_custom_call.1} parent=1 // pred_check_branch
      %41 = sbr.rel (0) target = $region17
    $region16: #{tpu_custom_call.1} parent=1 // pred_region
      %s43 = ssub.s32 2048, 2048
      %44 = vsyncadd [#allocation6], %s43
      %s45 = sshll.u32 [#allocation7], 4
      %s46 = int_to_ptr.vmem [resolvable:$true] %s45
      %51 = dma.hbm_to_vmem [thread:$0]  %s3, 2048, %s46, [#allocation6], 128, 128, 8
    $region17: #{tpu_custom_call.1} parent=1 // pred_fallthru
      _
    // Predicated region
    $region18: #{tpu_custom_call.1} parent=1 // pred_check
      _
    $region19: #{tpu_custom_call.1} parent=1 // pred_check_branch
      %53 = sbr.rel (0) target = $region21
    $region20: #{tpu_custom_call.1} parent=1 // pred_region
      _
    $region21: #{tpu_custom_call.1} parent=1 // pred_fallthru
      _
    // Predicated region
    $region22: #{tpu_custom_call.1} parent=1 // pred_check
      _
    $region23: #{tpu_custom_call.1} parent=1 // pred_check_branch
      %55 = sbr.rel (0) target = $region25
    $region24: #{tpu_custom_call.1} parent=1 // pred_region
      %s57 = ssub.s32 2048, 2048
      %58 = vsyncadd [#allocation9], %s57
      %s59 = sshll.u32 [#allocation8], 4
      %s60 = int_to_ptr.vmem [resolvable:$true] %s59
      %65 = dma.hbm_to_vmem [thread:$0]  %s5, 2048, %s60, [#allocation9], 128, 128, 8
    $region25: #{tpu_custom_call.1} parent=1 // pred_fallthru
      _
    // Predicated region
    $region26: #{tpu_custom_call.1} parent=1 // pred_check
      _
    $region27: #{tpu_custom_call.1} parent=1 // pred_check_branch
      %67 = sbr.rel (0) target = $region29
    $region28: #{tpu_custom_call.1} parent=1 // pred_region
      _
    $region29: #{tpu_custom_call.1} parent=1 // pred_fallthru
      _
    // Predicated region
    $region30: #{tpu_custom_call.1} parent=1 // pred_check
      _
    $region31: #{tpu_custom_call.1} parent=1 // pred_check_branch
      %69 = sbr.rel (0) target = $region33
    $region32: #{tpu_custom_call.1} parent=1 // pred_region
      %70 = dma.done [#allocation3], 128
    $region33: #{tpu_custom_call.1} parent=1 // pred_fallthru
      _
    // Predicated region
    $region34: #{tpu_custom_call.1} parent=1 // pred_check
      _
    $region35: #{tpu_custom_call.1} parent=1 // pred_check_branch
      %72 = sbr.rel (0) target = $region37
    $region36: #{tpu_custom_call.1} parent=1 // pred_region
      %73 = dma.done [#allocation6], 2048
    $region37: #{tpu_custom_call.1} parent=1 // pred_fallthru
      _
    // Predicated region
    $region38: #{tpu_custom_call.1} parent=1 // pred_check
      _
    $region39: #{tpu_custom_call.1} parent=1 // pred_check_branch
      %75 = sbr.rel (0) target = $region41
    $region40: #{tpu_custom_call.1} parent=1 // pred_region
      %76 = dma.done [#allocation6], 2048
    $region41: #{tpu_custom_call.1} parent=1 // pred_fallthru
      _
    // Predicated region
    $region42: #{tpu_custom_call.1} parent=1 // pred_check
      _
    $region43: #{tpu_custom_call.1} parent=1 // pred_check_branch
      %78 = sbr.rel (0) target = $region45
    $region44: #{tpu_custom_call.1} parent=1 // pred_region
      %79 = dma.done [#allocation9], 2048
    $region45: #{tpu_custom_call.1} parent=1 // pred_fallthru
      _
    %v80 = vld [vmem:[#allocation2] sm:$0xff]
    %v81 = vld [vmem:[%s2] sm:$0x1]
    %v82 = vld [vmem:[%s4] sm:$0x1]
    %v83 = vld [vmem:[%s6] sm:$0x1]
    %v84 = vld [vmem:[#allocation5] sm:$0xff]
    %v85 = vld [vmem:[#allocation5 + $0x8] sm:$0xff]
    %v86 = vld [vmem:[#allocation5 + $0x10] sm:$0xff]
    %v87 = vld [vmem:[#allocation5 + $0x18] sm:$0xff]
    %v88 = vld [vmem:[#allocation5 + $0x20] sm:$0xff]
    %v89 = vld [vmem:[#allocation5 + $0x28] sm:$0xff]
    %v90 = vld [vmem:[#allocation5 + $0x30] sm:$0xff]
    %v91 = vld [vmem:[#allocation5 + $0x38] sm:$0xff]
    %v92 = vld [vmem:[#allocation5 + $0x40] sm:$0xff]
    %v93 = vld [vmem:[#allocation5 + $0x48] sm:$0xff]
    %v94 = vld [vmem:[#allocation5 + $0x50] sm:$0xff]
    %v95 = vld [vmem:[#allocation5 + $0x58] sm:$0xff]
    %v96 = vld [vmem:[#allocation5 + $0x60] sm:$0xff]
    %v97 = vld [vmem:[#allocation5 + $0x68] sm:$0xff]
    %v98 = vld [vmem:[#allocation5 + $0x70] sm:$0xff]
    %v99 = vld [vmem:[#allocation5 + $0x78] sm:$0xff]
    %v101 = vlaneseq
    %v102 = vshrl.u32 %v101, 7
    %v103 = vsub.s32 0, %v102
    %v104 = vrot.slane %v81, %v103
    %106 = vmatprep.subr.mxu0 0.0
    %107 = vmatpush1.msra.mxu0 %v84
    %108 = vmatprep.subr.mxu0 0.0
    %109 = vmatpush1.msra.mxu0 %v85
    %110 = vmatprep.subr.mxu0 0.0
    %111 = vmatpush1.msra.mxu0 %v86
    %112 = vmatprep.subr.mxu0 0.0
    %113 = vmatpush1.msra.mxu0 %v87
    %114 = vmatprep.subr.mxu0 0.0
    %115 = vmatpush1.msra.mxu0 %v88
    %116 = vmatprep.subr.mxu0 0.0
    %117 = vmatpush1.msra.mxu0 %v89
    %118 = vmatprep.subr.mxu0 0.0
    %119 = vmatpush1.msra.mxu0 %v90
    %120 = vmatprep.subr.mxu0 0.0
    %121 = vmatpush1.msra.mxu0 %v91
    %122 = vmatprep.subr.mxu0 0.0
    %123 = vmatpush1.msra.mxu0 %v92
    %124 = vmatprep.subr.mxu0 0.0
    %125 = vmatpush1.msra.mxu0 %v93
    %126 = vmatprep.subr.mxu0 0.0
    %127 = vmatpush1.msra.mxu0 %v94
    %128 = vmatprep.subr.mxu0 0.0
    %129 = vmatpush1.msra.mxu0 %v95
    %130 = vmatprep.subr.mxu0 0.0
    %131 = vmatpush1.msra.mxu0 %v96
    %132 = vmatprep.subr.mxu0 0.0
    %133 = vmatpush1.msra.mxu0 %v97
    %134 = vmatprep.subr.mxu0 0.0
    %135 = vmatpush1.msra.mxu0 %v98
    %136 = vmatprep.subr.mxu0 0.0
    %137 = vmatpush1.msra.mxu0 %v99
    %138 = vmatprep.subr.mxu0 0.0
    %139 = vmatpush1.msra.mxu0 0.0
    %140 = vmatprep.subr.mxu0 0.0
    %141 = vmatpush1.msra.mxu0 0.0
    %142 = vmatprep.subr.mxu0 0.0
    %143 = vmatpush1.msra.mxu0 0.0
    %144 = vmatprep.subr.mxu0 0.0
    %145 = vmatpush1.msra.mxu0 0.0
    %146 = vmatprep.subr.mxu0 0.0
    %147 = vmatpush1.msra.mxu0 0.0
    %148 = vmatprep.subr.mxu0 0.0
    %149 = vmatpush1.msra.mxu0 0.0
    %150 = vmatprep.subr.mxu0 0.0
    %151 = vmatpush1.msra.mxu0 0.0
    %152 = vmatprep.subr.mxu0 0.0
    %153 = vmatpush1.msra.mxu0 0.0
    %154 = vmatprep.subr.mxu0 0.0
    %155 = vmatpush1.msra.mxu0 0.0
    %156 = vmatprep.subr.mxu0 0.0
    %157 = vmatpush1.msra.mxu0 0.0
    %158 = vmatprep.subr.mxu0 0.0
    %159 = vmatpush1.msra.mxu0 0.0
    %160 = vmatprep.subr.mxu0 0.0
    %161 = vmatpush1.msra.mxu0 0.0
    %162 = vmatprep.subr.mxu0 0.0
    %163 = vmatpush1.msra.mxu0 0.0
    %164 = vmatprep.subr.mxu0 0.0
    %165 = vmatpush1.msra.mxu0 0.0
    %166 = vmatprep.subr.mxu0 0.0
    %167 = vmatpush1.msra.mxu0 0.0
    %168 = vmatprep.subr.mxu0 0.0
    %169 = vmatpush1.msra.mxu0 0.0
    %170 = vmatprep.mubr.f32.mxu0 0.0
    %171 = vmatmul.mubr.f32.gmra.mrb[0].mxu0 %v80
    %v172 = vpop.f32.mrb[0].mxu0
    %v173 = vadd.f32 %v104, %v172
    %v174 = vpop.f32.mrb[0].mxu0
    %175 = vdwg.mxu0
    %v176 = vmax.f32 %v173, 0.0
    %v177 = vld [vmem:[#allocation7] sm:$0xff]
    %v178 = vld [vmem:[#allocation7 + $0x8] sm:$0xff]
    %v179 = vld [vmem:[#allocation7 + $0x10] sm:$0xff]
    %v180 = vld [vmem:[#allocation7 + $0x18] sm:$0xff]
    %v181 = vld [vmem:[#allocation7 + $0x20] sm:$0xff]
    %v182 = vld [vmem:[#allocation7 + $0x28] sm:$0xff]
    %v183 = vld [vmem:[#allocation7 + $0x30] sm:$0xff]
    %v184 = vld [vmem:[#allocation7 + $0x38] sm:$0xff]
    %v185 = vld [vmem:[#allocation7 + $0x40] sm:$0xff]
    %v186 = vld [vmem:[#allocation7 + $0x48] sm:$0xff]
    %v187 = vld [vmem:[#allocation7 + $0x50] sm:$0xff]
    %v188 = vld [vmem:[#allocation7 + $0x58] sm:$0xff]
    %v189 = vld [vmem:[#allocation7 + $0x60] sm:$0xff]
    %v190 = vld [vmem:[#allocation7 + $0x68] sm:$0xff]
    %v191 = vld [vmem:[#allocation7 + $0x70] sm:$0xff]
    %v192 = vld [vmem:[#allocation7 + $0x78] sm:$0xff]
    %v194 = vlaneseq
    %v195 = vshrl.u32 %v194, 7
    %v196 = vsub.s32 0, %v195
    %v197 = vrot.slane %v82, %v196
    %199 = vmatprep.subr.mxu0 0.0
    %200 = vmatpush1.msra.mxu0 %v177
    %201 = vmatprep.subr.mxu0 0.0
    %202 = vmatpush1.msra.mxu0 %v178
    %203 = vmatprep.subr.mxu0 0.0
    %204 = vmatpush1.msra.mxu0 %v179
    %205 = vmatprep.subr.mxu0 0.0
    %206 = vmatpush1.msra.mxu0 %v180
    %207 = vmatprep.subr.mxu0 0.0
    %208 = vmatpush1.msra.mxu0 %v181
    %209 = vmatprep.subr.mxu0 0.0
    %210 = vmatpush1.msra.mxu0 %v182
    %211 = vmatprep.subr.mxu0 0.0
    %212 = vmatpush1.msra.mxu0 %v183
    %213 = vmatprep.subr.mxu0 0.0
    %214 = vmatpush1.msra.mxu0 %v184
    %215 = vmatprep.subr.mxu0 0.0
    %216 = vmatpush1.msra.mxu0 %v185
    %217 = vmatprep.subr.mxu0 0.0
    %218 = vmatpush1.msra.mxu0 %v186
    %219 = vmatprep.subr.mxu0 0.0
    %220 = vmatpush1.msra.mxu0 %v187
    %221 = vmatprep.subr.mxu0 0.0
    %222 = vmatpush1.msra.mxu0 %v188
    %223 = vmatprep.subr.mxu0 0.0
    %224 = vmatpush1.msra.mxu0 %v189
    %225 = vmatprep.subr.mxu0 0.0
    %226 = vmatpush1.msra.mxu0 %v190
    %227 = vmatprep.subr.mxu0 0.0
    %228 = vmatpush1.msra.mxu0 %v191
    %229 = vmatprep.subr.mxu0 0.0
    %230 = vmatpush1.msra.mxu0 %v192
    %231 = vmatprep.subr.mxu0 0.0
    %232 = vmatpush1.msra.mxu0 0.0
    %233 = vmatprep.subr.mxu0 0.0
    %234 = vmatpush1.msra.mxu0 0.0
    %235 = vmatprep.subr.mxu0 0.0
    %236 = vmatpush1.msra.mxu0 0.0
    %237 = vmatprep.subr.mxu0 0.0
    %238 = vmatpush1.msra.mxu0 0.0
    %239 = vmatprep.subr.mxu0 0.0
    %240 = vmatpush1.msra.mxu0 0.0
    %241 = vmatprep.subr.mxu0 0.0
    %242 = vmatpush1.msra.mxu0 0.0
    %243 = vmatprep.subr.mxu0 0.0
    %244 = vmatpush1.msra.mxu0 0.0
    %245 = vmatprep.subr.mxu0 0.0
    %246 = vmatpush1.msra.mxu0 0.0
    %247 = vmatprep.subr.mxu0 0.0
    %248 = vmatpush1.msra.mxu0 0.0
    %249 = vmatprep.subr.mxu0 0.0
    %250 = vmatpush1.msra.mxu0 0.0
    %251 = vmatprep.subr.mxu0 0.0
    %252 = vmatpush1.msra.mxu0 0.0
    %253 = vmatprep.subr.mxu0 0.0
    %254 = vmatpush1.msra.mxu0 0.0
    %255 = vmatprep.subr.mxu0 0.0
    %256 = vmatpush1.msra.mxu0 0.0
    %257 = vmatprep.subr.mxu0 0.0
    %258 = vmatpush1.msra.mxu0 0.0
    %259 = vmatprep.subr.mxu0 0.0
    %260 = vmatpush1.msra.mxu0 0.0
    %261 = vmatprep.subr.mxu0 0.0
    %262 = vmatpush1.msra.mxu0 0.0
    %263 = vmatprep.mubr.f32.mxu0 0.0
    %264 = vmatmul.mubr.f32.gmra.mrb[0].mxu0 %v176
    %v265 = vpop.f32.mrb[0].mxu0
    %v266 = vadd.f32 %v197, %v265
    %v267 = vpop.f32.mrb[0].mxu0
    %268 = vdwg.mxu0
    %v269 = vmax.f32 %v266, 0.0
    %v270 = vld [vmem:[#allocation8] sm:$0xff]
    %v271 = vld [vmem:[#allocation8 + $0x8] sm:$0xff]
    %v272 = vld [vmem:[#allocation8 + $0x10] sm:$0xff]
    %v273 = vld [vmem:[#allocation8 + $0x18] sm:$0xff]
    %v274 = vld [vmem:[#allocation8 + $0x20] sm:$0xff]
    %v275 = vld [vmem:[#allocation8 + $0x28] sm:$0xff]
    %v276 = vld [vmem:[#allocation8 + $0x30] sm:$0xff]
    %v277 = vld [vmem:[#allocation8 + $0x38] sm:$0xff]
    %v278 = vld [vmem:[#allocation8 + $0x40] sm:$0xff]
    %v279 = vld [vmem:[#allocation8 + $0x48] sm:$0xff]
    %v280 = vld [vmem:[#allocation8 + $0x50] sm:$0xff]
    %v281 = vld [vmem:[#allocation8 + $0x58] sm:$0xff]
    %v282 = vld [vmem:[#allocation8 + $0x60] sm:$0xff]
    %v283 = vld [vmem:[#allocation8 + $0x68] sm:$0xff]
    %v284 = vld [vmem:[#allocation8 + $0x70] sm:$0xff]
    %v285 = vld [vmem:[#allocation8 + $0x78] sm:$0xff]
    %v287 = vlaneseq
    %v288 = vshrl.u32 %v287, 7
    %v289 = vsub.s32 0, %v288
    %v290 = vrot.slane %v83, %v289
    %292 = vmatprep.subr.mxu0 0.0
    %293 = vmatpush1.msra.mxu0 %v270
    %294 = vmatprep.subr.mxu0 0.0
    %295 = vmatpush1.msra.mxu0 %v271
    %296 = vmatprep.subr.mxu0 0.0
    %297 = vmatpush1.msra.mxu0 %v272
    %298 = vmatprep.subr.mxu0 0.0
    %299 = vmatpush1.msra.mxu0 %v273
    %300 = vmatprep.subr.mxu0 0.0
    %301 = vmatpush1.msra.mxu0 %v274
    %302 = vmatprep.subr.mxu0 0.0
    %303 = vmatpush1.msra.mxu0 %v275
    %304 = vmatprep.subr.mxu0 0.0
    %305 = vmatpush1.msra.mxu0 %v276
    %306 = vmatprep.subr.mxu0 0.0
    %307 = vmatpush1.msra.mxu0 %v277
    %308 = vmatprep.subr.mxu0 0.0
    %309 = vmatpush1.msra.mxu0 %v278
    %310 = vmatprep.subr.mxu0 0.0
    %311 = vmatpush1.msra.mxu0 %v279
    %312 = vmatprep.subr.mxu0 0.0
    %313 = vmatpush1.msra.mxu0 %v280
    %314 = vmatprep.subr.mxu0 0.0
    %315 = vmatpush1.msra.mxu0 %v281
    %316 = vmatprep.subr.mxu0 0.0
    %317 = vmatpush1.msra.mxu0 %v282
    %318 = vmatprep.subr.mxu0 0.0
    %319 = vmatpush1.msra.mxu0 %v283
    %320 = vmatprep.subr.mxu0 0.0
    %321 = vmatpush1.msra.mxu0 %v284
    %322 = vmatprep.subr.mxu0 0.0
    %323 = vmatpush1.msra.mxu0 %v285
    %324 = vmatprep.subr.mxu0 0.0
    %325 = vmatpush1.msra.mxu0 0.0
    %326 = vmatprep.subr.mxu0 0.0
    %327 = vmatpush1.msra.mxu0 0.0
    %328 = vmatprep.subr.mxu0 0.0
    %329 = vmatpush1.msra.mxu0 0.0
    %330 = vmatprep.subr.mxu0 0.0
    %331 = vmatpush1.msra.mxu0 0.0
    %332 = vmatprep.subr.mxu0 0.0
    %333 = vmatpush1.msra.mxu0 0.0
    %334 = vmatprep.subr.mxu0 0.0
    %335 = vmatpush1.msra.mxu0 0.0
    %336 = vmatprep.subr.mxu0 0.0
    %337 = vmatpush1.msra.mxu0 0.0
    %338 = vmatprep.subr.mxu0 0.0
    %339 = vmatpush1.msra.mxu0 0.0
    %340 = vmatprep.subr.mxu0 0.0
    %341 = vmatpush1.msra.mxu0 0.0
    %342 = vmatprep.subr.mxu0 0.0
    %343 = vmatpush1.msra.mxu0 0.0
    %344 = vmatprep.subr.mxu0 0.0
    %345 = vmatpush1.msra.mxu0 0.0
    %346 = vmatprep.subr.mxu0 0.0
    %347 = vmatpush1.msra.mxu0 0.0
    %348 = vmatprep.subr.mxu0 0.0
    %349 = vmatpush1.msra.mxu0 0.0
    %350 = vmatprep.subr.mxu0 0.0
    %351 = vmatpush1.msra.mxu0 0.0
    %352 = vmatprep.subr.mxu0 0.0
    %353 = vmatpush1.msra.mxu0 0.0
    %354 = vmatprep.subr.mxu0 0.0
    %355 = vmatpush1.msra.mxu0 0.0
    %356 = vmatprep.mubr.f32.mxu0 0.0
    %357 = vmatmul.mubr.f32.gmra.mrb[0].mxu0 %v269
    %v358 = vpop.f32.mrb[0].mxu0
    %v359 = vadd.f32 %v290, %v358
    %v360 = vpop.f32.mrb[0].mxu0
    %361 = vdwg.mxu0
    %362 = vst [vmem:[#allocation10] sm:$0xff] %v359
    // Predicated region
    $region46: #{tpu_custom_call.1} parent=1 // pred_check
      _
    $region47: #{tpu_custom_call.1} parent=1 // pred_check_branch
      %364 = sbr.rel (0) target = $region49
    $region48: #{tpu_custom_call.1} parent=1 // pred_region
      %s366 = ssub.s32 128, 128
      %367 = vsyncadd [#allocation4], %s366
      %s369 = sshll.u32 [#allocation10], 4
      %s370 = int_to_ptr.vmem [resolvable:$true] %s369
      %372 = dma.vmem_to_hbm [thread:$0]  %s370, 128, %s7, [#allocation4]
    $region49: #{tpu_custom_call.1} parent=1 // pred_fallthru
      _
    // Predicated region
    $region50: #{tpu_custom_call.1} parent=1 // pred_check
      _
    $region51: #{tpu_custom_call.1} parent=1 // pred_check_branch
      %374 = sbr.rel (0) target = $region53
    $region52: #{tpu_custom_call.1} parent=1 // pred_region
      %375 = dma.done [#allocation4], 128
    $region53: #{tpu_custom_call.1} parent=1 // pred_fallthru
      _
    %376 = vsyncpa [#allocation3], 1
    %377 = vsyncpa [#allocation6], 1
    %378 = vsyncpa [#allocation9], 1
    %379 = vsyncpa [#allocation4], 1

</llo_original>
